<compile_context>
chip_gen: v5e
topology: v5e:2x2
jax: 0.10.0
libtpu: 0.0.40
codegen_flags: <defaults>
</compile_context>

<pallas_src>
import functools

import jax
import jax.numpy as jnp
from jax import lax
from jax.experimental import pallas as pl
from jax.experimental.pallas import tpu as pltpu


def _round_up(v, m):
    return ((v + m - 1) // m) * m


def _focal_loss_kernel(nvalid_ref, x_ref, t_ref, a_ref, o_ref, acc_ref, *, gamma):
    """One grid step: a (C, T) slab of logits -> partial focal-loss sum.

    nvalid_ref : SMEM (1,) int32    number of valid spatial positions (H*W)
    x_ref      : (1, C, T) float    logits slab (cast to f32 in-kernel)
    t_ref      : (1, 1, T) int32    target class per position (lane-dense)
    a_ref      : (C, 1)   float32   per-class alpha weights (ones if alpha=None)
    o_ref      : (1, 1, 1) float32  per-(batch, split) partial sum
    acc_ref    : (1, T)   float32   vector accumulator scratch
    """
    s_idx = pl.program_id(1)              # split index (parallel)
    j = pl.program_id(2)                  # tile index within split (arbitrary)
    tiles_per_split = pl.num_programs(2)

    @pl.when(j == 0)
    def _():
        acc_ref[...] = jnp.zeros_like(acc_ref)

    x = x_ref[0].astype(jnp.float32)      # (C, T)
    t = t_ref[0]                          # (1, T) int32
    c, tl = x.shape

    # log_softmax over the class (sublane) axis  == F.log_softmax(input, dim=1)
    m = jnp.max(x, axis=0, keepdims=True)                          # (1, T)
    s = x - m
    lse = jnp.log(jnp.sum(jnp.exp(s), axis=0, keepdims=True))      # (1, T)
    logp = s - lse                                                 # (C, T)

    # gather logpt / alpha at the target class via one-hot (cheap sublane sums)
    cls = lax.broadcasted_iota(jnp.int32, (c, tl), 0)
    onehot = (cls == t).astype(jnp.float32)                        # (C, T)
    logpt = jnp.sum(logp * onehot, axis=0, keepdims=True)          # (1, T)
    pt = jnp.exp(logpt)
    at = jnp.sum(a_ref[...] * onehot, axis=0, keepdims=True)       # (1, T)
    logpt_w = logpt * at

    one_minus_pt = 1.0 - pt
    if isinstance(gamma, int):
        if gamma == 0:
            focal = jnp.ones_like(pt)
        else:
            focal = one_minus_pt
            for _ in range(int(gamma) - 1):      # repeated VPU multiplies
                focal = focal * one_minus_pt
    else:
        focal = one_minus_pt ** gamma
    loss = -focal * logpt_w                                         # (1, T)

    # mask out padded spatial positions (positions >= H*W contribute 0)
    tile_idx = s_idx * tiles_per_split + j
    pos = tile_idx * tl + lax.broadcasted_iota(jnp.int32, (1, tl), 1)
    loss = jnp.where(pos < nvalid_ref[0], loss, 0.0)

    acc_ref[...] += loss                     # elementwise; no per-step x-lane reduce

    @pl.when(j == tiles_per_split - 1)
    def _():
        o_ref[...] = jnp.sum(acc_ref[...], keepdims=True).reshape(1, 1, 1)


def focal_loss(logits, target, gamma=0, alpha=None, size_average=True,
               lane_tile=None):
    """Pallas implementation of FocalLoss.forward.

    logits: (N, C, H, W) (or (M, C)) float array
    target: (N, H, W) / (N, 1, H, W) / (M,) integer class indices
    alpha : None | float (C must be 2, as in the module) | per-class weights
    """
    # ---- layout: consume logits as (N, C, HW) directly; no transpose ----------
    if logits.ndim > 2:
        n, c = logits.shape[0], logits.shape[1]
        x3 = logits.reshape(n, c, -1)                       # (N, C, HW), metadata only
        t3 = target.reshape(n, 1, -1).astype(jnp.int32)     # (N, 1, HW)
    else:
        # (M, C) path (minor use case): classes are already minor -> one transpose.
        n, c = 1, logits.shape[1]
        x3 = jnp.transpose(logits, (1, 0))[None]            # (1, C, M)
        t3 = target.reshape(1, 1, -1).astype(jnp.int32)
    hw = x3.shape[2]
    assert t3.shape[2] == hw

    # ---- alpha setup (same semantics as the module __init__) ------------------
    if isinstance(alpha, (float, int)) and not isinstance(alpha, bool):
        alpha_vec = jnp.array([alpha, 1.0 - alpha], dtype=jnp.float32)  # needs C == 2
    elif isinstance(alpha, (list, tuple)):
        alpha_vec = jnp.array(alpha, dtype=jnp.float32)
    elif alpha is None:
        alpha_vec = jnp.ones((c,), dtype=jnp.float32)
    else:
        alpha_vec = jnp.asarray(alpha, dtype=jnp.float32).reshape(-1)
    assert alpha_vec.shape[0] == c, "alpha must have one weight per class"
    alpha2 = alpha_vec.reshape(c, 1)

    # ---- lane-tile selection: ~0.5 MiB of logits per block, multiple of 128 ---
    itemsize = jnp.dtype(x3.dtype).itemsize
    if lane_tile is None:
        budget_lanes = max(128, min(32768, ((1 << 20) // (c * itemsize)) // 128 * 128))
        num_tiles = pl.cdiv(_round_up(hw, 128), budget_lanes)
        t = _round_up(pl.cdiv(_round_up(hw, 128), num_tiles), 128)
    else:
        assert lane_tile % 128 == 0
        t = lane_tile
    hw_pad = t * pl.cdiv(hw, t)
    num_tiles = hw_pad // t
    if hw_pad != hw:
        x3 = jnp.pad(x3, ((0, 0), (0, 0), (0, hw_pad - hw)))
        t3 = jnp.pad(t3, ((0, 0), (0, 0), (0, hw_pad - hw)))

    # v7x has 2 TensorCores: ensure a >=2-wide parallel axis even when N == 1.
    if n >= 2 or num_tiles < 2 or num_tiles % 2 != 0:
        splits = 1
    else:
        splits = 2
    tiles_per_split = num_tiles // splits

    nvalid = jnp.array([hw], dtype=jnp.int32)
    kernel = functools.partial(_focal_loss_kernel, gamma=gamma)

    partials = pl.pallas_call(
        kernel,
        out_shape=jax.ShapeDtypeStruct((n * splits, 1, 1), jnp.float32),
        grid_spec=pltpu.PrefetchScalarGridSpec(
            num_scalar_prefetch=1,
            grid=(n, splits, tiles_per_split),
            in_specs=[
                # logits slab: classes on sublanes, positions lane-dense
                pl.BlockSpec((1, c, t),
                             lambda b, s, j, nv: (b, 0, s * tiles_per_split + j)),
                # targets: lane-dense int32
                pl.BlockSpec((1, 1, t),
                             lambda b, s, j, nv: (b, 0, s * tiles_per_split + j)),
                # alpha: tiny, resident
                pl.BlockSpec((c, 1), lambda b, s, j, nv: (0, 0)),
            ],
            out_specs=pl.BlockSpec((1, 1, 1),
                                   lambda b, s, j, nv: (b * splits + s, 0, 0)),
            scratch_shapes=[pltpu.VMEM((1, t), jnp.float32)],
        ),
        compiler_params=pltpu.CompilerParams(
            dimension_semantics=("parallel", "parallel", "arbitrary"),
            vmem_limit_bytes=32 * 1024 * 1024),
    )(nvalid, x3, t3, alpha2)

    loss_sum = jnp.sum(partials)
    if size_average:
        return loss_sum / jnp.float32(n * hw)
    return loss_sum


def _focal_loss_ref(logits, target, gamma=0, alpha=None, size_average=True):
    """Pure-JAX reference mirroring the PyTorch forward."""
    if logits.ndim > 2:
        n, c = logits.shape[0], logits.shape[1]
        x = jnp.transpose(logits.reshape(n, c, -1), (0, 2, 1)).reshape(-1, c)
    else:
        x = logits
    c = x.shape[1]
    t = target.reshape(-1).astype(jnp.int32)
    logp = jax.nn.log_softmax(x.astype(jnp.float32), axis=1)
    logpt = jnp.take_along_axis(logp, t[:, None], axis=1)[:, 0]
    pt = jnp.exp(logpt)
    if alpha is not None:
        if isinstance(alpha, (float, int)) and not isinstance(alpha, bool):
            a = jnp.array([alpha, 1.0 - alpha], dtype=jnp.float32)
        else:
            a = jnp.asarray(alpha, dtype=jnp.float32)
        logpt = logpt * a[t]
    loss = -1.0 * (1.0 - pt) ** gamma * logpt
    return loss.mean() if size_average else loss.sum()


if __name__ == "__main__":
    key = jax.random.PRNGKey(0)
    k1, k2, k3, k4 = jax.random.split(key, 4)

    # Case 1: NCHW logits, gamma + per-class alpha + size_average.
    N, C, H, W = 2, 4, 16, 16
    logits = jax.random.normal(k1, (N, C, H, W), dtype=jnp.float32)
    target = jax.random.randint(k2, (N, H, W), 0, C, dtype=jnp.int32)
    gamma, alpha = 2, [0.1, 0.2, 0.3, 0.4]
    out = jax.block_until_ready(
        focal_loss(logits, target, gamma=gamma, alpha=alpha, size_average=True))
    ref = _focal_loss_ref(logits, target, gamma=gamma, alpha=alpha,
                          size_average=True)
    assert jnp.allclose(out, ref, rtol=1e-5, atol=1e-5), (out, ref)

    # Case 2: module defaults (gamma=0, alpha=None, size_average=True).
    out_d = jax.block_until_ready(focal_loss(logits, target))
    ref_d = _focal_loss_ref(logits, target)
    assert jnp.allclose(out_d, ref_d, rtol=1e-5, atol=1e-5), (out_d, ref_d)

    # Case 3: N=1 with a forced small lane tile -> exercises the multi-tile
    # accumulation loop and the 2-way split parallel axis (v7x dual-core path).
    N2, H2, W2 = 1, 32, 32
    logits2 = jax.random.normal(k3, (N2, C, H2, W2), dtype=jnp.float32)
    target2 = jax.random.randint(k4, (N2, H2, W2), 0, C, dtype=jnp.int32)
    out2 = jax.block_until_ready(
        focal_loss(logits2, target2, gamma=2, alpha=None, size_average=False,
                   lane_tile=128))
    ref2 = _focal_loss_ref(logits2, target2, gamma=2, alpha=None,
                           size_average=False)
    assert jnp.allclose(out2, ref2, rtol=1e-5, atol=1e-4), (out2, ref2)

    print("KERNEL_OK")
</pallas_src>

<mosaic_0001>
module attributes {stable_mosaic.version = 11 : i64} {
  func.func @_focal_loss_kernel(%arg0: i32, %arg1: i32, %arg2: i32, %arg3: memref<1xi32, #tpu.memory_space<smem>>, %arg4: memref<1x4x256xf32, #tpu.memory_space<vmem>>, %arg5: memref<1x1x256xi32, #tpu.memory_space<vmem>>, %arg6: memref<4x1xf32, #tpu.memory_space<vmem>>, %arg7: memref<1x1x1xf32, #tpu.memory_space<vmem>>, %arg8: memref<1x256xf32, #tpu.memory_space<vmem>>) attributes {dimension_semantics = [#tpu.dimension_semantics<parallel>, #tpu.dimension_semantics<parallel>, #tpu.dimension_semantics<arbitrary>], iteration_bounds = array<i64: 2, 1, 1>, scalar_prefetch = 1 : i64, scratch_operands = 1 : i64, tpu.core_type = #tpu.core_type<tc>, window_params = [{transform_indices = @transform_0, window_bounds = array<i64: 1, 4, 256>}, {transform_indices = @transform_1, window_bounds = array<i64: 1, 1, 256>}, {pipeline_mode = #tpu.pipeline_mode<synchronous>, transform_indices = @transform_2, window_bounds = array<i64: 4, 1>}, {transform_indices = @transform_3, window_bounds = array<i64: 1, 1, 1>}]} {
    %c0_i32 = arith.constant 0 : i32
    %0 = arith.cmpi eq, %arg2, %c0_i32 : i32
    %1 = arith.extui %0 : i1 to i32
    %c0_i32_0 = arith.constant 0 : i32
    %2 = arith.cmpi ne, %1, %c0_i32_0 : i32
    scf.if %2 {
      %cst_21 = arith.constant 0.000000e+00 : f32
      %55 = vector.broadcast %cst_21 : f32 to vector<1x256xf32>
      %c0_22 = arith.constant 0 : index
      %c0_23 = arith.constant 0 : index
      %56 = vector.load %arg8[%c0_22, %c0_23] : memref<1x256xf32, #tpu.memory_space<vmem>>, vector<1x256xf32>
      tpu.vector_store %arg8[%c0_22, %c0_23], %55 {strides = array<i32>} : memref<1x256xf32, #tpu.memory_space<vmem>>, vector<1x256xf32>,
    } else {
    }
    %c0 = arith.constant 0 : index
    %c0_1 = arith.constant 0 : index
    %c0_2 = arith.constant 0 : index
    %3 = vector.load %arg4[%c0, %c0_1, %c0_2] : memref<1x4x256xf32, #tpu.memory_space<vmem>>, vector<1x4x256xf32>
    %4 = vector.shape_cast %3 : vector<1x4x256xf32> to vector<4x256xf32>
    %c0_3 = arith.constant 0 : index
    %c0_4 = arith.constant 0 : index
    %c0_5 = arith.constant 0 : index
    %5 = vector.load %arg5[%c0_3, %c0_4, %c0_5] : memref<1x1x256xi32, #tpu.memory_space<vmem>>, vector<1x1x256xi32>
    %6 = vector.shape_cast %5 : vector<1x1x256xi32> to vector<1x256xi32>
    %cst = arith.constant dense<0xFF800000> : vector<256xf32>
    %7 = vector.multi_reduction <maximumf>, %4, %cst [0] : vector<4x256xf32> to vector<256xf32>
    %8 = vector.shape_cast %7 : vector<256xf32> to vector<1x256xf32>
    %9 = vector.broadcast %8 : vector<1x256xf32> to vector<4x256xf32>
    %10 = arith.subf %4, %9 : vector<4x256xf32>
    %11 = math.exp %10 : vector<4x256xf32>
    %cst_6 = arith.constant dense<0.000000e+00> : vector<256xf32>
    %12 = vector.multi_reduction <add>, %11, %cst_6 [0] : vector<4x256xf32> to vector<256xf32>
    %13 = vector.shape_cast %12 : vector<256xf32> to vector<1x256xf32>
    %14 = math.log %13 : vector<1x256xf32>
    %15 = vector.broadcast %14 : vector<1x256xf32> to vector<4x256xf32>
    %16 = arith.subf %10, %15 : vector<4x256xf32>
    %17 = tpu.iota {dimensions = array<i32: 0>} : vector<4x256xi32>
    %18 = vector.broadcast %6 : vector<1x256xi32> to vector<4x256xi32>
    %19 = arith.cmpi eq, %17, %18 : vector<4x256xi32>
    %20 = arith.extui %19 : vector<4x256xi1> to vector<4x256xi32>
    %21 = arith.sitofp %20 : vector<4x256xi32> to vector<4x256xf32>
    %22 = arith.mulf %16, %21 : vector<4x256xf32>
    %cst_7 = arith.constant dense<0.000000e+00> : vector<256xf32>
    %23 = vector.multi_reduction <add>, %22, %cst_7 [0] : vector<4x256xf32> to vector<256xf32>
    %24 = vector.shape_cast %23 : vector<256xf32> to vector<1x256xf32>
    %25 = math.exp %24 : vector<1x256xf32>
    %c0_8 = arith.constant 0 : index
    %c0_9 = arith.constant 0 : index
    %26 = vector.load %arg6[%c0_8, %c0_9] : memref<4x1xf32, #tpu.memory_space<vmem>>, vector<4x1xf32>
    %27 = vector.broadcast %26 : vector<4x1xf32> to vector<4x256xf32>
    %28 = arith.mulf %27, %21 : vector<4x256xf32>
    %cst_10 = arith.constant dense<0.000000e+00> : vector<256xf32>
    %29 = vector.multi_reduction <add>, %28, %cst_10 [0] : vector<4x256xf32> to vector<256xf32>
    %30 = vector.shape_cast %29 : vector<256xf32> to vector<1x256xf32>
    %31 = arith.mulf %24, %30 : vector<1x256xf32>
    %cst_11 = arith.constant 1.000000e+00 : f32
    %32 = vector.broadcast %cst_11 : f32 to vector<1x256xf32>
    %33 = arith.subf %32, %25 : vector<1x256xf32>
    %34 = arith.mulf %33, %33 : vector<1x256xf32>
    %cst_12 = arith.constant 0.000000e+00 : f32
    %35 = vector.broadcast %cst_12 : f32 to vector<1x256xf32>
    %36 = arith.subf %35, %34 : vector<1x256xf32>
    %37 = arith.mulf %36, %31 : vector<1x256xf32>
    %c1_i32 = arith.constant 1 : i32
    %38 = arith.muli %arg1, %c1_i32 : i32
    %39 = arith.addi %38, %arg2 : i32
    %c256_i32 = arith.constant 256 : i32
    %40 = arith.muli %39, %c256_i32 : i32
    %41 = tpu.iota {dimensions = array<i32: 1>} : vector<1x256xi32>
    %42 = vector.broadcast %40 : i32 to vector<1x256xi32>
    %43 = arith.addi %42, %41 : vector<1x256xi32>
    %c0_13 = arith.constant 0 : index
    %44 = memref.load %arg3[%c0_13] : memref<1xi32, #tpu.memory_space<smem>>
    %45 = vector.broadcast %44 : i32 to vector<1x256xi32>
    %46 = arith.cmpi slt, %43, %45 : vector<1x256xi32>
    %cst_14 = arith.constant 0.000000e+00 : f32
    %47 = vector.broadcast %cst_14 : f32 to vector<1x256xf32>
    %48 = arith.select %46, %37, %47 : vector<1x256xi1>, vector<1x256xf32>
    %c0_15 = arith.constant 0 : index
    %c0_16 = arith.constant 0 : index
    %49 = vector.load %arg8[%c0_15, %c0_16] : memref<1x256xf32, #tpu.memory_space<vmem>>, vector<1x256xf32>
    %50 = arith.addf %49, %48 : vector<1x256xf32>
    %c0_17 = arith.constant 0 : index
    %c0_18 = arith.constant 0 : index
    %51 = vector.load %arg8[%c0_17, %c0_18] : memref<1x256xf32, #tpu.memory_space<vmem>>, vector<1x256xf32>
    tpu.vector_store %arg8[%c0_17, %c0_18], %50 {strides = array<i32>} : memref<1x256xf32, #tpu.memory_space<vmem>>, vector<1x256xf32>,
    %c0_i32_19 = arith.constant 0 : i32
    %52 = arith.cmpi eq, %arg2, %c0_i32_19 : i32
    %53 = arith.extui %52 : i1 to i32
    %c0_i32_20 = arith.constant 0 : i32
    %54 = arith.cmpi ne, %53, %c0_i32_20 : i32
    scf.if %54 {
      %c0_21 = arith.constant 0 : index
      %c0_22 = arith.constant 0 : index
      %55 = vector.load %arg8[%c0_21, %c0_22] : memref<1x256xf32, #tpu.memory_space<vmem>>, vector<1x256xf32>
      %56 = vector.shape_cast %55 : vector<1x256xf32> to vector<1x1x256xf32>
      %cst_23 = arith.constant dense<0.000000e+00> : vector<1xf32>
      %57 = vector.multi_reduction <add>, %56, %cst_23 [1, 2] : vector<1x1x256xf32> to vector<1xf32>
      %58 = vector.shape_cast %57 : vector<1xf32> to vector<1x1x1xf32>
      %59 = vector.extract %58[0, 0, 0] : f32 from vector<1x1x1xf32>
      %60 = vector.broadcast %59 : f32 to vector<1x1xf32>
      %61 = vector.shape_cast %60 : vector<1x1xf32> to vector<1x1x1xf32>
      %c0_24 = arith.constant 0 : index
      %c0_25 = arith.constant 0 : index
      %c0_26 = arith.constant 0 : index
      %62 = vector.load %arg7[%c0_24, %c0_25, %c0_26] : memref<1x1x1xf32, #tpu.memory_space<vmem>>, vector<1x1x1xf32>
      tpu.vector_store %arg7[%c0_24, %c0_25, %c0_26], %61 {strides = array<i32>} : memref<1x1x1xf32, #tpu.memory_space<vmem>>, vector<1x1x1xf32>,
    } else {
    }
    return
  }
  func.func @transform_0(%arg0: i32, %arg1: i32, %arg2: i32, %arg3: memref<1xi32, #tpu.memory_space<smem>>) -> (i32, i32, i32) {
    %c1_i32 = arith.constant 1 : i32
    %0 = arith.muli %arg1, %c1_i32 : i32
    %1 = arith.addi %0, %arg2 : i32
    %c0_i32 = arith.constant 0 : i32
    %c0_i32_0 = arith.constant 0 : i32
    return %arg0, %c0_i32, %1 : i32, i32, i32
  }
  func.func @transform_1(%arg0: i32, %arg1: i32, %arg2: i32, %arg3: memref<1xi32, #tpu.memory_space<smem>>) -> (i32, i32, i32) {
    %c1_i32 = arith.constant 1 : i32
    %0 = arith.muli %arg1, %c1_i32 : i32
    %1 = arith.addi %0, %arg2 : i32
    %c0_i32 = arith.constant 0 : i32
    %c0_i32_0 = arith.constant 0 : i32
    return %arg0, %c0_i32, %1 : i32, i32, i32
  }
  func.func @transform_2(%arg0: i32, %arg1: i32, %arg2: i32, %arg3: memref<1xi32, #tpu.memory_space<smem>>) -> (i32, i32) {
    %c0_i32 = arith.constant 0 : i32
    %c0_i32_0 = arith.constant 0 : i32
    %c0_i32_1 = arith.constant 0 : i32
    return %c0_i32, %c0_i32_0 : i32, i32
  }
  func.func @transform_3(%arg0: i32, %arg1: i32, %arg2: i32, %arg3: memref<1xi32, #tpu.memory_space<smem>>) -> (i32, i32, i32) {
    %c1_i32 = arith.constant 1 : i32
    %0 = arith.muli %arg0, %c1_i32 : i32
    %1 = arith.addi %0, %arg1 : i32
    %c0_i32 = arith.constant 0 : i32
    %c0_i32_0 = arith.constant 0 : i32
    %c0_i32_1 = arith.constant 0 : i32
    return %1, %c0_i32, %c0_i32_0 : i32, i32, i32
  }
}

</mosaic_0001>

<llo_original>
// kernel: tpu_custom_call.1
$region0: #{tpu_custom_call.1}
  #allocation0 [shape = 'u32[]', space=smem, size = 0x4, offset = 0x4, fixed_abs, tag = 'smem constant byte address 0x4 - core index']
  #allocation1 [shape = 'u32[72,128]{1,0:T(1,128)}', space=vmem, size = 0x9000, scoped, tag = 'internal scratch']
  #allocation2 [shape = 'f32[1,256]{1,0:T(1,128)}', space=vmem, size = 0x400, scoped, tag = 'scratch operand']
  #allocation3 [shape = 's32[1]{0}', space=sflag, size = 0x4, scoped, tag = 'scoped memory for tpu_custom_call.1']
  #allocation4 [shape = 's32[1]{0:T(128)S(6)}', space=smem, size = 0x200, scoped, tag = 'prefetched SMEM operand 0']
  %s0 = inlined_call_operand.<no memory space> [shape: s32[1], index: 0, kind: input, shape index: {}]
  %s1 = inlined_call_operand.hbm [shape: f32[2,4,256], index: 1, kind: input, shape index: {}]
  %s2 = inlined_call_operand.vmem [shape: s32[2,1,256], index: 2, kind: input, shape index: {}]
  %s3 = inlined_call_operand.vmem [shape: f32[4,1], index: 3, kind: input, shape index: {}]
  %s4 = inlined_call_operand.vmem [shape: f32[2,1,1], index: 4, kind: output, shape index: {}]
  %s5 = sld [smem:[#allocation0]]
  $region57: #{tpu_custom_call.1} parent=0
    _
  %s7 = ssub.s32 1, %s5
  %s8 = scalar_select 0, %s7, %s5
  %9 = sst [smem:[#allocation4]] %s0
  $region1: #{tpu_custom_call.1} parent=0
    #allocation5 [shape = 'u8[8192]{0}', space=vmem, size = 0x2000, scoped, tag = 'input window, operand 1']
    #allocation6 [shape = 's32[2]{0}', space=sflag, size = 0x8, scoped, tag = 'scoped memory for tpu_custom_call.1']
    %10 = vsyncpa [#allocation6], 0
    %s11 = scalar_lea.sflag [#allocation6], 1
    %12 = vsyncpa %s11, 0
    loop: start=0, step=1, limit=4
    $region2: #{tpu_custom_call.1} parent=1 // loop_pre_header
      _
    $region3: #{tpu_custom_call.1} parent=1 // loop_header
      %s14 = sphi 0, %s18
      %p15 = scmp.ge.s32.totalorder %s14, 4
      %s21 = sphi 0, %s40
      %s22 = sphi 0, %s36
      %s23 = sphi 0, %s32
      %s24 = sphi 0, %s21
      %s25 = sphi 0, %s22
      %s26 = sphi 0, %s23
      %s27 = sphi 0, %s24
      %s28 = sphi 0, %s25
      %s29 = sphi 0, %s26
      %s47 = sphi 0, %s49
      %s50 = sphi 0, %s47
      %s51 = sphi 0, %s50
      %s67 = sphi 0, %s51
      %s77 = sphi 0, %s79
      %s80 = sphi 0, %s77
      %s81 = sphi 0, %s80
      %s97 = sphi 0, %s81
      %s101 = sphi 0, %s101
      %s103 = sphi 0, %s101
      %s104 = sphi 0, %s103
      %s118 = sphi 0, %s104
      %s126 = sphi 0, %s128
      %s129 = sphi 0, %s126
      %s130 = sphi 0, %s129
      %s146 = sphi 0, %s130
    $region4: #{tpu_custom_call.1} parent=1 // loop_header_branch
      %17 = sbr.rel (%p15) target = $region8
    $region5: #{tpu_custom_call.1} parent=1 // loop_body
      %s19 = ssub.s32 %s14, 1
      %s20 = ssub.s32 %s14, 2
      %s30 = sadd.s32 1, %s23
      %p31 = scmp.ge.s32.totalorder %s30, 1
      %s32 = scalar_select %p31, 0, %s30
      %s33 = sadd.s32 1, %s22
      %s34 = scalar_select %p31, %s33, %s22
      %p35 = scmp.ge.s32.totalorder %s34, 1
      %s36 = scalar_select %p35, 0, %s34
      %s37 = sadd.s32 1, %s21
      %s38 = scalar_select %p35, %s37, %s21
      %p39 = scmp.ge.s32.totalorder %s38, 2
      %s40 = scalar_select %p39, 0, %s38
      %s41 = sadd.s32 %s22, %s23
      %s42 = sadd.s32 %s36, %s32
      %s43 = ssub.s32 %s21, %s40
      %s44 = ssub.s32 %s41, %s42
      %s45 = sor.u32 %s43, %s44
      %p46 = scmp.eq.s32.totalorder %s45, 0
      %s48 = sadd.s32 %s47, 1
      %s49 = scalar_select %p46, %s47, %s48
      %p52 = pneg %p46
      %p53 = scmp.eq.s32.totalorder %s14, 1
      %p54 = por %p52, %p53
      %p55 = scmp.ne.s32.totalorder %s47, %s50
      %p56 = scmp.eq.s32.totalorder %s14, 0
      %p57 = por %p55, %p56
      %p58 = scmp.ne.s32.totalorder %s47, %s50
      %p59 = scmp.eq.s32.totalorder %s19, 1
      %p60 = por %p58, %p59
      %p61 = scmp.ne.s32.totalorder %s50, %s51
      %p62 = scmp.eq.s32.totalorder %s19, 0
      %p63 = por %p61, %p62
      %p64 = scmp.ne.s32.totalorder %s50, %s51
      %p65 = scmp.eq.s32.totalorder %s20, 1
      %p66 = por %p64, %p65
      %p68 = scmp.ne.s32.totalorder %s51, %s67
      %p69 = scmp.eq.s32.totalorder %s20, 0
      %p70 = por %p68, %p69
      %s71 = sadd.s32 %s22, %s23
      %s72 = sadd.s32 %s36, %s32
      %s73 = ssub.s32 %s21, %s40
      %s74 = ssub.s32 %s71, %s72
      %s75 = sor.u32 %s73, %s74
      %p76 = scmp.eq.s32.totalorder %s75, 0
      %s78 = sadd.s32 %s77, 1
      %s79 = scalar_select %p76, %s77, %s78
      %p82 = pneg %p76
      %p83 = scmp.eq.s32.totalorder %s14, 1
      %p84 = por %p82, %p83
      %p85 = scmp.ne.s32.totalorder %s77, %s80
      %p86 = scmp.eq.s32.totalorder %s14, 0
      %p87 = por %p85, %p86
      %p88 = scmp.ne.s32.totalorder %s77, %s80
      %p89 = scmp.eq.s32.totalorder %s19, 1
      %p90 = por %p88, %p89
      %p91 = scmp.ne.s32.totalorder %s80, %s81
      %p92 = scmp.eq.s32.totalorder %s19, 0
      %p93 = por %p91, %p92
      %p94 = scmp.ne.s32.totalorder %s80, %s81
      %p95 = scmp.eq.s32.totalorder %s20, 1
      %p96 = por %p94, %p95
      %p98 = scmp.ne.s32.totalorder %s81, %s97
      %p99 = scmp.eq.s32.totalorder %s20, 0
      %p100 = por %p98, %p99
      %s102 = sadd.s32 %s101, 1
      %p105 = scmp.eq.s32.totalorder %s14, 1
      %p106 = scmp.ne.s32.totalorder %s101, %s103
      %p107 = scmp.eq.s32.totalorder %s14, 0
      %p108 = por %p106, %p107
      %p109 = scmp.ne.s32.totalorder %s101, %s103
      %p110 = scmp.eq.s32.totalorder %s19, 1
      %p111 = por %p109, %p110
      %p112 = scmp.ne.s32.totalorder %s103, %s104
      %p113 = scmp.eq.s32.totalorder %s19, 0
      %p114 = por %p112, %p113
      %p115 = scmp.ne.s32.totalorder %s103, %s104
      %p116 = scmp.eq.s32.totalorder %s20, 1
      %p117 = por %p115, %p116
      %p119 = scmp.ne.s32.totalorder %s104, %s118
      %p120 = scmp.eq.s32.totalorder %s20, 0
      %p121 = por %p119, %p120
      %s122 = sadd.s32 %s21, %s22
      %s123 = sadd.s32 %s40, %s36
      %s124 = ssub.s32 %s122, %s123
      %p125 = scmp.eq.s32.totalorder %s124, 0
      %s127 = sadd.s32 %s126, 1
      %s128 = scalar_select %p125, %s126, %s127
      %p131 = pneg %p125
      %p132 = scmp.eq.s32.totalorder %s14, 1
      %p133 = por %p131, %p132
      %p134 = scmp.ne.s32.totalorder %s126, %s129
      %p135 = scmp.eq.s32.totalorder %s14, 0
      %p136 = por %p134, %p135
      %p137 = scmp.ne.s32.totalorder %s126, %s129
      %p138 = scmp.eq.s32.totalorder %s19, 1
      %p139 = por %p137, %p138
      %p140 = scmp.ne.s32.totalorder %s129, %s130
      %p141 = scmp.eq.s32.totalorder %s19, 0
      %p142 = por %p140, %p141
      %p143 = scmp.ne.s32.totalorder %s129, %s130
      %p144 = scmp.eq.s32.totalorder %s20, 1
      %p145 = por %p143, %p144
      %p147 = scmp.ne.s32.totalorder %s130, %s146
      %p148 = scmp.eq.s32.totalorder %s20, 0
      %p149 = por %p147, %p148
      %p150 = scmp.le.s32.totalorder 1, %s14
      %p151 = scmp.lt.s32.totalorder %s14, 3
      %p152 = pnand %p150, %p151
      %p153 = pneg %p152
      // Predicated region
      $region9: #{tpu_custom_call.1} parent=5 // pred_check
        _
      $region10: #{tpu_custom_call.1} parent=5 // pred_check_branch
        %155 = sbr.rel (%p152) target = $region12
      $region11: #{tpu_custom_call.1} parent=5 // pred_region
        %s156 = ssub.s32 %s14, 1
        // Predicated region
        $region13: #{tpu_custom_call.1} parent=11 // pred_check
          %p157 = pneg %p114
        $region14: #{tpu_custom_call.1} parent=11 // pred_check_branch
          %159 = sbr.rel (%p157) target = $region16
        $region15: #{tpu_custom_call.1} parent=11 // pred_region
          _
        $region16: #{tpu_custom_call.1} parent=11 // pred_fallthru
          _
      $region12: #{tpu_custom_call.1} parent=5 // pred_fallthru
        _
      %p160 = scmp.lt.s32.totalorder %s14, 2
      // Predicated region
      $region17: #{tpu_custom_call.1} parent=5 // pred_check
        %p161 = pneg %p160
      $region18: #{tpu_custom_call.1} parent=5 // pred_check_branch
        %163 = sbr.rel (%p161) target = $region20
      $region19: #{tpu_custom_call.1} parent=5 // pred_region
        // Predicated region
        $region21: #{tpu_custom_call.1} parent=19 // pred_check
          %p164 = pneg %p57
        $region22: #{tpu_custom_call.1} parent=19 // pred_check_branch
          %166 = sbr.rel (%p164) target = $region24
        $region23: #{tpu_custom_call.1} parent=19 // pred_region
          %s167 = sand.u32 %s47, 1
          %s168 = scalar_lea.sflag [#allocation6], %s167
          %s169 = sand.u32 %s47, 1
          %s170 = smul.addr %s169, 8
          %s171 = scalar_lea.vmem [#allocation5], %s170
          %s172 = sadd.s32 %s22, %s23
          %s173 = smul.u32 2, %s172
          %175 = vsyncadd %s168, 0
          %s176 = smul.addr %s21, 2
          %s177 = sadd.s32 %s173, %s176
          %s178 = smul.addr %s177, 4
          %s179 = scalar_lea.hbm %s1, %s178
          %s181 = sshll.u32 %s179, 4
          %s182 = int_to_ptr.hbm [resolvable:$true] %s181
          %s183 = sshll.u32 %s171, 4
          %s184 = int_to_ptr.vmem [resolvable:$true] %s183
          %186 = dma.hbm_to_vmem [thread:$0]  %s182, 128, %s184, %s168
        $region24: #{tpu_custom_call.1} parent=19 // pred_fallthru
          _
        // Predicated region
        $region25: #{tpu_custom_call.1} parent=19 // pred_check
          %p187 = pneg %p87
        $region26: #{tpu_custom_call.1} parent=19 // pred_check_branch
          %189 = sbr.rel (%p187) target = $region28
        $region27: #{tpu_custom_call.1} parent=19 // pred_region
          %s190 = sadd.s32 %s22, %s23
          %s191 = smul.u32 2, %s190
          %p192 = scmp.lt.s32.totalorder %s21, 1
          %s193 = scalar_select %p192, %s21, 1
          %p194 = scmp.lt.s32.totalorder %s191, 1
          %s195 = scalar_select %p194, %s191, 1
          %s196 = smul.addr %s193, 2
          %s197 = sadd.s32 %s195, %s196
          %s198 = scalar_lea.vmem %s2, %s197
          %s199 = sadd.s32 %s22, %s23
          %s200 = smul.u32 2, %s199
        $region28: #{tpu_custom_call.1} parent=19 // pred_fallthru
          _
      $region20: #{tpu_custom_call.1} parent=5 // pred_fallthru
        _
      %p201 = scmp.le.s32.totalorder 1, %s14
      %p202 = scmp.lt.s32.totalorder %s14, 3
      %p203 = pnand %p201, %p202
      %p204 = pneg %p203
      // Predicated region
      $region29: #{tpu_custom_call.1} parent=5 // pred_check
        _
      $region30: #{tpu_custom_call.1} parent=5 // pred_check_branch
        %206 = sbr.rel (%p203) target = $region32
      $region31: #{tpu_custom_call.1} parent=5 // pred_region
        %s207 = ssub.s32 %s14, 1
        %s208 = sand.u32 %s50, 1
        %s209 = scalar_lea.sflag [#allocation6], %s208
        %s210 = sand.u32 %s50, 1
        %s211 = smul.addr %s210, 8
        %s212 = scalar_lea.vmem [#allocation5], %s211
        // Predicated region
        $region33: #{tpu_custom_call.1} parent=31 // pred_check
          %p213 = pneg %p63
        $region34: #{tpu_custom_call.1} parent=31 // pred_check_branch
          %215 = sbr.rel (%p213) target = $region36
        $region35: #{tpu_custom_call.1} parent=31 // pred_region
          %217 = dma.done %s209, 128
        $region36: #{tpu_custom_call.1} parent=31 // pred_fallthru
          _
        %s218 = sand.u32 %s50, 1
        %s219 = scalar_lea.sflag [#allocation6], %s218
        %s220 = sand.u32 %s50, 1
        %s221 = smul.addr %s220, 8
        %s222 = scalar_lea.vmem [#allocation5], %s221
        %p223 = pneg %p63
        %p224 = pneg %p60
        %s225 = sadd.s32 %s25, %s26
        %s226 = smul.u32 2, %s225
        %p227 = scmp.lt.s32.totalorder %s24, 1
        %s228 = scalar_select %p227, %s24, 1
        %p229 = scmp.lt.s32.totalorder %s226, 1
        %s230 = scalar_select %p229, %s226, 1
        %s231 = smul.addr %s228, 2
        %s232 = sadd.s32 %s230, %s231
        %s233 = scalar_lea.vmem %s2, %s232
        %p234 = pneg %p93
        %p235 = pneg %p90
        %p236 = pneg %p114
        %p237 = pneg %p111
        %p238 = pneg %p142
        %p239 = pneg %p139
        %s240 = sadd.s32 %s24, %s25
        %p241 = scmp.lt.s32.totalorder %s240, 1
        %s242 = scalar_select %p241, %s240, 1
        %s243 = scalar_lea.vmem %s4, %s242
        %s244 = sadd.s32 %s25, %s26
        %s245 = smul.u32 2, %s244
        %s246 = sadd.s32 %s25, %s26
        %s247 = smul.u32 2, %s246
        %p248 = scmp.lt.s32.totalorder %s24, 1
        %s249 = scalar_select %p248, %s24, 1
        %p250 = scmp.lt.s32.totalorder %s247, 1
        %s251 = scalar_select %p250, %s247, 1
        %s252 = smul.addr %s249, 2
        %s253 = sadd.s32 %s251, %s252
        %s254 = scalar_lea.vmem %s2, %s253
        %s255 = sadd.s32 %s25, %s26
        %s256 = smul.u32 2, %s255
        %s257 = sadd.s32 %s24, %s25
        %p258 = scmp.lt.s32.totalorder %s257, 1
        %s259 = scalar_select %p258, %s257, 1
        %s260 = scalar_lea.vmem %s4, %s259
        %s261 = sadd.s32 %s24, %s25
        %p262 = scmp.eq.s32.totalorder %s26, 0
        // Predicated region
        $region37: #{tpu_custom_call.1} parent=31 // pred_check
          %p263 = pneg %p262
        $region38: #{tpu_custom_call.1} parent=31 // pred_check_branch
          %265 = sbr.rel (%p263) target = $region40
        $region39: #{tpu_custom_call.1} parent=31 // pred_region
          %v266 = vlaneseq
          %vm267 = vcmp.ge.s32.totalorder %v266, 0
          %vm268 = vcmp.lt.s32.totalorder %v266, 256
          %vm269 = vmand %vm267, %vm268
          %270 = vst.msk [vmem:[#allocation2] sm:$0x3] %vm269, 0.0
        $region40: #{tpu_custom_call.1} parent=31 // pred_fallthru
          _
        %v271 = vld [vmem:[%s212] sm:$0xff]
        %v272 = vld [vmem:[%s254] sm:$0x3]
        %274 = vst [vmem:[#allocation1] ss:$2 sm:$0xff] %v271
        %v275 = vld.sshfl [vmem:[#allocation1] sm:$0xff pattern:$0x75316420]
        %v276 = vld.sshfl [vmem:[#allocation1 + $0x8] sm:$0xff pattern:$0x75316420]
        %vm279 = vcmask 1043456
        %v280 = vsel %vm279, %v275, -inf
        %v281 = vrot.slane %v280, 4
        %v282 = vmax.f32 %v280, %v281
        %v283 = vrot.slane %v282, 2
        %v284 = vmax.f32 %v282, %v283
        %v285 = vrot.slane %v284, 1
        %v286 = vmax.f32 %v284, %v285
        %v287 = vsel %vm279, %v276, -inf
        %v288 = vrot.slane %v287, 4
        %v289 = vmax.f32 %v287, %v288
        %v290 = vrot.slane %v289, 2
        %v291 = vmax.f32 %v289, %v290
        %v292 = vrot.slane %v291, 1
        %v293 = vmax.f32 %v291, %v292
        %v296 = vrot.slane %v293, 4
        %v297 = vsel %vm279, %v286, %v296
        %v299 = vsub.f32 %v271, %v297
        %v300 = vmul.f32 %v299, 1.442695
        %v301 = vpow.pop %v300
        %303 = vst [vmem:[#allocation1] ss:$2 sm:$0xff] %v301
        %v304 = vld.sshfl [vmem:[#allocation1] sm:$0xff pattern:$0x75316420]
        %v305 = vld.sshfl [vmem:[#allocation1 + $0x8] sm:$0xff pattern:$0x75316420]
        %v308 = vsel %vm279, %v304, 0.0
        %v309 = vrot.slane %v308, 4
        %v310 = vadd.f32 %v308, %v309
        %v311 = vrot.slane %v310, 2
        %v312 = vadd.f32 %v310, %v311
        %v313 = vrot.slane %v312, 1
        %v314 = vadd.f32 %v312, %v313
        %v315 = vsel %vm279, %v305, 0.0
        %v316 = vrot.slane %v315, 4
        %v317 = vadd.f32 %v315, %v316
        %v318 = vrot.slane %v317, 2
        %v319 = vadd.f32 %v317, %v318
        %v320 = vrot.slane %v319, 1
        %v321 = vadd.f32 %v319, %v320
        %v322 = vlog2.pop %v314
        %v323 = vmul.f32 %v322, 0.6931472
        %v324 = vlog2.pop %v321
        %v325 = vmul.f32 %v324, 0.6931472
        %v328 = vrot.slane %v325, 4
        %v329 = vsel %vm279, %v323, %v328
        %v331 = vsub.f32 %v299, %v329
        %v332 = vlaneseq
        %v333 = vshrl.u32 %v332, 7
        %v334 = vperm.slane %v272, 0
        %v335 = vperm.slane %v272, 1
        %vm336 = vcmp.eq.s32.totalorder %v333, %v334
        %vm337 = vcmp.eq.s32.totalorder %v333, %v335
        %v338 = vsel %vm336, 1, 0
        %v339 = vsel %vm337, 1, 0
        %v340 = vcvt.s32.f32 %v338
        %v341 = vcvt.s32.f32 %v339
        %v344 = vrot.slane %v341, 4
        %v345 = vsel %vm279, %v340, %v344
        %v347 = vmul.f32 %v331, %v345
        %349 = vst [vmem:[#allocation1] ss:$2 sm:$0xff] %v347
        %v350 = vld.sshfl [vmem:[#allocation1] sm:$0xff pattern:$0x75316420]
        %v351 = vld.sshfl [vmem:[#allocation1 + $0x8] sm:$0xff pattern:$0x75316420]
        %v354 = vsel %vm279, %v350, 0.0
        %v355 = vrot.slane %v354, 4
        %v356 = vadd.f32 %v354, %v355
        %v357 = vrot.slane %v356, 2
        %v358 = vadd.f32 %v356, %v357
        %v359 = vrot.slane %v358, 1
        %v360 = vadd.f32 %v358, %v359
        %v361 = vsel %vm279, %v351, 0.0
        %v362 = vrot.slane %v361, 4
        %v363 = vadd.f32 %v361, %v362
        %v364 = vrot.slane %v363, 2
        %v365 = vadd.f32 %v363, %v364
        %v366 = vrot.slane %v365, 1
        %v367 = vadd.f32 %v365, %v366
        %v368 = vmul.f32 %v360, 1.442695
        %v369 = vpow.pop %v368
        %v370 = vmul.f32 %v367, 1.442695
        %v371 = vpow.pop %v370
        %v372 = vld [vmem:[%s3] sm:$0xf]
        %374 = vset.pattern.permute.xlu0 0
        %375 = vperm.xlu0 %374, %v372
        %v376 = vpop.permute.xlu0 %375
        %v378 = vmul.f32 %v376, %v340
        %v379 = vmul.f32 %v376, %v341
        %v380 = vsel %vm279, %v378, 0.0
        %v381 = vrot.slane %v380, 4
        %v382 = vadd.f32 %v380, %v381
        %v383 = vrot.slane %v382, 2
        %v384 = vadd.f32 %v382, %v383
        %v385 = vrot.slane %v384, 1
        %v386 = vadd.f32 %v384, %v385
        %v387 = vsel %vm279, %v379, 0.0
        %v388 = vrot.slane %v387, 4
        %v389 = vadd.f32 %v387, %v388
        %v390 = vrot.slane %v389, 2
        %v391 = vadd.f32 %v389, %v390
        %v392 = vrot.slane %v391, 1
        %v393 = vadd.f32 %v391, %v392
        %v394 = vmul.f32 %v360, %v386
        %v395 = vmul.f32 %v367, %v393
        %v396 = vsub.f32 1.0, %v369
        %v397 = vsub.f32 1.0, %v371
        %v398 = vmul.f32 %v396, %v396
        %v399 = vmul.f32 %v397, %v397
        %v400 = vsub.f32 0.0, %v398
        %v401 = vsub.f32 0.0, %v399
        %v402 = vmul.f32 %v400, %v394
        %v403 = vmul.f32 %v401, %v395
        %s404 = sadd.s32 %s25, %s26
        %s405 = smul.u32 %s404, 256
        %v406 = vlaneseq
        %v407 = vand.u32 %v406, 127
        %v408 = vadd.s32 %v407, 128
        %v409 = vstv %s405
        %v410 = vadd.s32 %v409, %v407
        %v411 = vadd.s32 %v409, %v408
        %s412 = sld [smem:[#allocation4]]
        %v413 = vstv %s412
        %vm414 = vcmp.lt.s32.totalorder %v410, %v413
        %vm415 = vcmp.lt.s32.totalorder %v411, %v413
        %v416 = vsel %vm414, %v402, 0.0
        %v417 = vsel %vm415, %v403, 0.0
        %v418 = vld [vmem:[#allocation2] sm:$0x3]
        %v421 = vrot.slane %v417, 7
        %vm422 = vcmask 1040384
        %v423 = vsel %vm422, %v416, %v421
        %v425 = vadd.f32 %v418, %v423
        %v426 = vlaneseq
        %vm427 = vcmp.ge.s32.totalorder %v426, 0
        %vm428 = vcmp.lt.s32.totalorder %v426, 256
        %vm429 = vmand %vm427, %vm428
        %430 = vst.msk [vmem:[#allocation2] sm:$0x3] %vm429, %v425
        // Predicated region
        $region41: #{tpu_custom_call.1} parent=31 // pred_check
          %p431 = pneg %p262
        $region42: #{tpu_custom_call.1} parent=31 // pred_check_branch
          %433 = sbr.rel (%p431) target = $region44
        $region43: #{tpu_custom_call.1} parent=31 // pred_region
          %v434 = vld [vmem:[#allocation2] sm:$0x3]
          %v436 = vperm.slane %v434, 0
          %v437 = vperm.slane %v434, 1
          %v440 = vsel %vm422, %v436, 0.0
          %v441 = vsel %vm422, %v437, 0.0
          %v442 = vadd.f32 %v440, %v441
          %443 = vadd.xlane.f32.xlu0 %v442
          %v444 = vpop.xlane.xlu0 %443
          %v445 = vrot.slane %v444, 4
          %v446 = vadd.f32 %v444, %v445
          %v447 = vrot.slane %v446, 2
          %v448 = vadd.f32 %v446, %v447
          %v449 = vrot.slane %v448, 1
          %v450 = vadd.f32 %v448, %v449
          %s451 = vtos %v450
          %v452 = vstv %s451
          %vm453 = vcmask 0
          %454 = vst.msk [vmem:[%s260] sm:$0x1] %vm453, %v452
        $region44: #{tpu_custom_call.1} parent=31 // pred_fallthru
          _
        %s455 = sadd.s32 %s24, %s25
        %p456 = scmp.lt.s32.totalorder %s455, 1
        %s457 = scalar_select %p456, %s455, 1
        %s458 = scalar_lea.vmem %s4, %s457
        // Predicated region
        $region45: #{tpu_custom_call.1} parent=31 // pred_check
          %p459 = pneg %p139
        $region46: #{tpu_custom_call.1} parent=31 // pred_check_branch
          %461 = sbr.rel (%p459) target = $region48
        $region47: #{tpu_custom_call.1} parent=31 // pred_region
          %s462 = sadd.s32 %s24, %s25
        $region48: #{tpu_custom_call.1} parent=31 // pred_fallthru
          _
      $region32: #{tpu_custom_call.1} parent=5 // pred_fallthru
        _
      %p463 = scmp.le.s32.totalorder 2, %s14
      // Predicated region
      $region49: #{tpu_custom_call.1} parent=5 // pred_check
        %p464 = pneg %p463
      $region50: #{tpu_custom_call.1} parent=5 // pred_check_branch
        %466 = sbr.rel (%p464) target = $region52
      $region51: #{tpu_custom_call.1} parent=5 // pred_region
        %s467 = ssub.s32 %s14, 2
        // Predicated region
        $region53: #{tpu_custom_call.1} parent=51 // pred_check
          %p468 = pneg %p145
        $region54: #{tpu_custom_call.1} parent=51 // pred_check_branch
          %470 = sbr.rel (%p468) target = $region56
        $region55: #{tpu_custom_call.1} parent=51 // pred_region
          %s471 = sadd.s32 %s27, %s28
          %p472 = scmp.lt.s32.totalorder %s471, 1
          %s473 = scalar_select %p472, %s471, 1
          %s474 = scalar_lea.vmem %s4, %s473
        $region56: #{tpu_custom_call.1} parent=51 // pred_fallthru
          _
      $region52: #{tpu_custom_call.1} parent=5 // pred_fallthru
        _
    $region6: #{tpu_custom_call.1} parent=1 // loop_footer
      %s18 = sadd.s32 1, %s14
    $region7: #{tpu_custom_call.1} parent=1 // loop_footer_branch
      %13 = sbr.rel target = $region3
    $region8: #{tpu_custom_call.1} parent=1 // loop_exit
      _
    %475 = vsyncpa [#allocation6], 1
    %s476 = scalar_lea.sflag [#allocation6], 1
    %477 = vsyncpa %s476, 1

</llo_original>
